<compile_context>
chip_gen: v7x
topology: tpu7x:2x2x1
jax: 0.10.0
libtpu: 0.0.40
codegen_flags: <defaults>
</compile_context>

<pallas_src>
import functools

import jax
import jax.numpy as jnp
import numpy as np
from jax.experimental import pallas as pl
from jax.experimental.pallas import tpu as pltpu

_LANES = 128                          # vreg lane width
_VMEM_BUDGET = 28 * 1024 * 1024       # headroom under the 32 MiB scoped limit


def _round_up(x, m):
    return ((x + m - 1) // m) * m


def _min_sublanes(dtype):
    # f32 -> 8, bf16 -> 16, int8/fp8 -> 32 (sub-32-bit dtypes pack along sublanes).
    return max(8, 32 // jnp.dtype(dtype).itemsize)


def _pe_kernel(x_ref, o_ref, *, freqs, use_double_angle, include_input):
    """Lane-dense tile.

    With include_input: o[0]=x, o[2j+1]=sin(f_j*x), o[2j+2]=cos(f_j*x).
    Without:            o[2j]=sin(f_j*x), o[2j+1]=cos(f_j*x).
    """
    x = x_ref[...]                                   # (tile_m, 128)
    off = 0
    if include_input:
        o_ref[0] = x.astype(o_ref.dtype)
        off = 1
    if not freqs:
        return
    if use_double_angle:
        # Bands are exact doublings: one sin/cos polynomial evaluation, then
        # each extra band is ~3 cheap VPU mul/FMAs (f32 for accuracy).
        xf = x.astype(jnp.float32)
        s = jnp.sin(freqs[0] * xf)
        c = jnp.cos(freqs[0] * xf)
        o_ref[off + 0] = s.astype(o_ref.dtype)
        o_ref[off + 1] = c.astype(o_ref.dtype)
        for j in range(1, len(freqs)):               # static unroll (few freqs)
            s, c = 2.0 * s * c, 1.0 - 2.0 * s * s
            o_ref[off + 2 * j] = s.astype(o_ref.dtype)
            o_ref[off + 2 * j + 1] = c.astype(o_ref.dtype)
    else:
        # Exact fallback for non-power-of-two frequency spacing.
        for j, f in enumerate(freqs):
            fx = f * x
            o_ref[off + 2 * j] = jnp.sin(fx).astype(o_ref.dtype)
            o_ref[off + 2 * j + 1] = jnp.cos(fx).astype(o_ref.dtype)


class PositionalEncoder:
    """JAX/Pallas equivalent of the PyTorch PositionalEncoder module."""

    def __init__(self, input_dim, max_freq_log2, num_freqs):
        self.input_dim = input_dim
        self.num_freqs = num_freqs
        # 2 ** torch.linspace(0, max_freq_log2, num_freqs); compile-time consts.
        self.freq_bands = tuple(
            float(v) for v in (2.0 ** np.linspace(0.0, max_freq_log2, num_freqs))
        )
        # Double-angle recurrence is exact only when consecutive bands are
        # exact doublings (standard NeRF: max_freq_log2 == num_freqs - 1).
        self._power_of_two_bands = num_freqs >= 2 and all(
            self.freq_bands[j + 1] == 2.0 * self.freq_bands[j]
            for j in range(num_freqs - 1)
        )
        # NOTE: mirrors the (off-by-one) attribute of the PyTorch module; the
        # actual forward output width is input_dim * (2 * num_freqs + 1).
        self.output_dim = input_dim * (2 * num_freqs)

    def encode_blocks(self, x, *, out_dtype=None, include_input=True,
                      tile_m=1024):
        """Lane-dense encode (the fast path).

        Returns (nparts, N, D): part 0 is x (if include_input), then
        sin(f_j x), cos(f_j x) pairs.  Downstream matmuls can consume this
        directly by permuting weight rows once, skipping any re-interleave.
        `out_dtype=jnp.bfloat16` halves output HBM bytes (writeback is the
        binding cost on v5e/v6e once the transcendental work is removed).
        """
        n, d = x.shape
        assert d == self.input_dim
        in_dtype = jnp.dtype(x.dtype)
        out_dtype = jnp.dtype(in_dtype if out_dtype is None else out_dtype)
        nparts = 2 * self.num_freqs + (1 if include_input else 0)
        nt = n * d

        # Flatten to a lane-dense (M, 128) slab, zero-padded to a whole number
        # of (tile_m, 128) blocks so every vector store is full and unmasked
        # and arbitrary N is supported.
        m_needed = -(-nt // _LANES)

        # Dtype-aware sublane rounding (covers both input and output blocks).
        sub = max(_min_sublanes(in_dtype), _min_sublanes(out_dtype))
        tile_m = _round_up(max(int(tile_m), 1), sub)

        # VMEM cap: double-buffered input+output tiles under ~28 MiB keeps us
        # inside the 32 MiB scoped limit and leaves headroom on v7x (64 MiB
        # physical VMEM).  Scales with num_freqs automatically.
        bytes_per_row = _LANES * (in_dtype.itemsize + nparts * out_dtype.itemsize)
        cap = max(sub, (_VMEM_BUDGET // (2 * bytes_per_row)) // sub * sub)
        tile_m = min(tile_m, cap)

        # Keep >= 2 grid steps when possible so the "parallel" grid axis can
        # shard row-tiles across both v7x TensorCores (no-op on v5e/v6e).
        half = _round_up(-(-max(m_needed, 1) // 2), sub)
        tile_m = min(tile_m, max(half, sub))

        m_pad = _round_up(max(m_needed, 1), tile_m)
        nt_pad = m_pad * _LANES

        xf = jnp.reshape(x, (nt,))
        if nt_pad != nt:
            xf = jnp.pad(xf, (0, nt_pad - nt))
        xs = xf.reshape(m_pad, _LANES)

        grid_m = pl.cdiv(m_pad, tile_m)
        kernel = functools.partial(
            _pe_kernel,
            freqs=self.freq_bands,
            use_double_angle=self._power_of_two_bands,
            include_input=include_input,
        )

        out = pl.pallas_call(
            kernel,
            out_shape=jax.ShapeDtypeStruct((nparts, m_pad, _LANES), out_dtype),
            grid_spec=pltpu.PrefetchScalarGridSpec(
                num_scalar_prefetch=0,
                grid=(grid_m,),
                in_specs=[pl.BlockSpec((tile_m, _LANES), lambda i: (i, 0))],
                # If a profile shows exposed output writeback DMA, a deeper
                # out buffer (pipeline_mode=pl.Buffered(3)) can hide the 13x
                # asymmetric writeback at the cost of extra VMEM.
                out_specs=pl.BlockSpec((nparts, tile_m, _LANES),
                                       lambda i: (0, i, 0)),
            ),
            compiler_params=pltpu.CompilerParams(
                dimension_semantics=("parallel",),
                vmem_limit_bytes=32 * 1024 * 1024,
            ),
        )(xs)

        # Drop the padding and expose the (parts, N, D) block layout.
        return out.reshape(nparts, nt_pad)[:, :nt].reshape(nparts, n, d)

    def __call__(self, x, *, tile_m=1024):
        """Matches torch: cat([x, sin(f1*x), cos(f1*x), ...], dim=1).

        The final transpose is one extra XLA pass over the expanded output;
        consumers that can absorb the column permutation into their first
        matmul should call encode_blocks() directly and skip it.
        """
        n, d = x.shape
        nparts = 2 * self.num_freqs + 1
        blocks = self.encode_blocks(x, tile_m=tile_m)     # (nparts, N, D)
        return blocks.transpose(1, 0, 2).reshape(n, nparts * d)


def _reference(x, freqs):
    parts = [x]
    for f in freqs:
        parts.append(jnp.sin(f * x))
        parts.append(jnp.cos(f * x))
    return jnp.concatenate(parts, axis=1)


if __name__ == "__main__":
    key = jax.random.PRNGKey(0)

    # 1) Standard NeRF config: power-of-two bands -> double-angle recurrence.
    N, D = 128, 4
    max_freq_log2, num_freqs = 5, 6
    x = jax.random.normal(key, (N, D), dtype=jnp.float32)
    enc = PositionalEncoder(D, max_freq_log2, num_freqs)
    out = jax.block_until_ready(enc(x))
    ref = _reference(x, enc.freq_bands)
    assert out.shape == (N, D * (2 * num_freqs + 1)), out.shape
    # Recurrence error compounds ~linearly per doubling -> slightly looser tol.
    np.testing.assert_allclose(np.asarray(out), np.asarray(ref),
                               rtol=1e-5, atol=2e-5)

    # 2) Non-power-of-two bands + ragged shape -> exact sin/cos fallback path.
    N2, D2 = 100, 3
    x2 = jax.random.normal(jax.random.PRNGKey(1), (N2, D2), dtype=jnp.float32)
    enc2 = PositionalEncoder(D2, 4.0, 9)   # log2 step = 0.5, not exact doublings
    out2 = jax.block_until_ready(enc2(x2))
    ref2 = _reference(x2, enc2.freq_bands)
    assert out2.shape == (N2, D2 * (2 * 9 + 1)), out2.shape
    np.testing.assert_allclose(np.asarray(out2), np.asarray(ref2),
                               rtol=1e-6, atol=1e-6)

    # 3) bf16 output + identity part dropped (v5e/v6e writeback-bound tuning).
    blocks = jax.block_until_ready(
        enc.encode_blocks(x, out_dtype=jnp.bfloat16, include_input=False))
    assert blocks.shape == (2 * num_freqs, N, D), blocks.shape
    ref_b = jnp.stack(
        [fn(f * x) for f in enc.freq_bands for fn in (jnp.sin, jnp.cos)], axis=0
    ).astype(jnp.bfloat16)
    np.testing.assert_allclose(np.asarray(blocks.astype(jnp.float32)),
                               np.asarray(ref_b.astype(jnp.float32)),
                               rtol=0.02, atol=0.02)

    print("KERNEL_OK")
</pallas_src>

<mosaic_0001>
module attributes {stable_mosaic.version = 11 : i64} {
  func.func @_pe_kernel(%arg0: i32, %arg1: memref<8x128xf32, #tpu.memory_space<vmem>>, %arg2: memref<13x8x128xf32, #tpu.memory_space<vmem>>) attributes {dimension_semantics = [#tpu.dimension_semantics<parallel>], iteration_bounds = array<i64: 1>, scalar_prefetch = 0 : i64, scratch_operands = 0 : i64, tpu.core_type = #tpu.core_type<tc>, window_params = [{transform_indices = @transform_0, window_bounds = array<i64: 8, 128>}, {transform_indices = @transform_1, window_bounds = array<i64: 13, 8, 128>}]} {
    %c0 = arith.constant 0 : index
    %c0_0 = arith.constant 0 : index
    %0 = vector.load %arg1[%c0, %c0_0] : memref<8x128xf32, #tpu.memory_space<vmem>>, vector<8x128xf32>
    %c0_1 = arith.constant 0 : index
    %c0_2 = arith.constant 0 : index
    %c0_3 = arith.constant 0 : index
    %1 = vector.load %arg2[%c0_1, %c0_2, %c0_3] : memref<13x8x128xf32, #tpu.memory_space<vmem>>, vector<1x8x128xf32>
    %2 = vector.shape_cast %1 : vector<1x8x128xf32> to vector<8x128xf32>
    %3 = vector.shape_cast %0 : vector<8x128xf32> to vector<1x8x128xf32>
    tpu.vector_store %arg2[%c0_1, %c0_2, %c0_3], %3 {strides = array<i32>} : memref<13x8x128xf32, #tpu.memory_space<vmem>>, vector<1x8x128xf32>,
    %cst = arith.constant 1.000000e+00 : f32
    %4 = vector.broadcast %cst : f32 to vector<8x128xf32>
    %5 = arith.mulf %4, %0 : vector<8x128xf32>
    %6 = math.sin %5 : vector<8x128xf32>
    %cst_4 = arith.constant 1.000000e+00 : f32
    %7 = vector.broadcast %cst_4 : f32 to vector<8x128xf32>
    %8 = arith.mulf %7, %0 : vector<8x128xf32>
    %9 = math.cos %8 : vector<8x128xf32>
    %c1 = arith.constant 1 : index
    %c0_5 = arith.constant 0 : index
    %c0_6 = arith.constant 0 : index
    %10 = vector.load %arg2[%c1, %c0_5, %c0_6] : memref<13x8x128xf32, #tpu.memory_space<vmem>>, vector<1x8x128xf32>
    %11 = vector.shape_cast %10 : vector<1x8x128xf32> to vector<8x128xf32>
    %12 = vector.shape_cast %6 : vector<8x128xf32> to vector<1x8x128xf32>
    tpu.vector_store %arg2[%c1, %c0_5, %c0_6], %12 {strides = array<i32>} : memref<13x8x128xf32, #tpu.memory_space<vmem>>, vector<1x8x128xf32>,
    %c2 = arith.constant 2 : index
    %c0_7 = arith.constant 0 : index
    %c0_8 = arith.constant 0 : index
    %13 = vector.load %arg2[%c2, %c0_7, %c0_8] : memref<13x8x128xf32, #tpu.memory_space<vmem>>, vector<1x8x128xf32>
    %14 = vector.shape_cast %13 : vector<1x8x128xf32> to vector<8x128xf32>
    %15 = vector.shape_cast %9 : vector<8x128xf32> to vector<1x8x128xf32>
    tpu.vector_store %arg2[%c2, %c0_7, %c0_8], %15 {strides = array<i32>} : memref<13x8x128xf32, #tpu.memory_space<vmem>>, vector<1x8x128xf32>,
    %cst_9 = arith.constant 2.000000e+00 : f32
    %16 = vector.broadcast %cst_9 : f32 to vector<8x128xf32>
    %17 = arith.mulf %16, %6 : vector<8x128xf32>
    %18 = arith.mulf %17, %9 : vector<8x128xf32>
    %cst_10 = arith.constant 2.000000e+00 : f32
    %19 = vector.broadcast %cst_10 : f32 to vector<8x128xf32>
    %20 = arith.mulf %19, %6 : vector<8x128xf32>
    %21 = arith.mulf %20, %6 : vector<8x128xf32>
    %cst_11 = arith.constant 1.000000e+00 : f32
    %22 = vector.broadcast %cst_11 : f32 to vector<8x128xf32>
    %23 = arith.subf %22, %21 : vector<8x128xf32>
    %c3 = arith.constant 3 : index
    %c0_12 = arith.constant 0 : index
    %c0_13 = arith.constant 0 : index
    %24 = vector.load %arg2[%c3, %c0_12, %c0_13] : memref<13x8x128xf32, #tpu.memory_space<vmem>>, vector<1x8x128xf32>
    %25 = vector.shape_cast %24 : vector<1x8x128xf32> to vector<8x128xf32>
    %26 = vector.shape_cast %18 : vector<8x128xf32> to vector<1x8x128xf32>
    tpu.vector_store %arg2[%c3, %c0_12, %c0_13], %26 {strides = array<i32>} : memref<13x8x128xf32, #tpu.memory_space<vmem>>, vector<1x8x128xf32>,
    %c4 = arith.constant 4 : index
    %c0_14 = arith.constant 0 : index
    %c0_15 = arith.constant 0 : index
    %27 = vector.load %arg2[%c4, %c0_14, %c0_15] : memref<13x8x128xf32, #tpu.memory_space<vmem>>, vector<1x8x128xf32>
    %28 = vector.shape_cast %27 : vector<1x8x128xf32> to vector<8x128xf32>
    %29 = vector.shape_cast %23 : vector<8x128xf32> to vector<1x8x128xf32>
    tpu.vector_store %arg2[%c4, %c0_14, %c0_15], %29 {strides = array<i32>} : memref<13x8x128xf32, #tpu.memory_space<vmem>>, vector<1x8x128xf32>,
    %cst_16 = arith.constant 2.000000e+00 : f32
    %30 = vector.broadcast %cst_16 : f32 to vector<8x128xf32>
    %31 = arith.mulf %30, %18 : vector<8x128xf32>
    %32 = arith.mulf %31, %23 : vector<8x128xf32>
    %cst_17 = arith.constant 2.000000e+00 : f32
    %33 = vector.broadcast %cst_17 : f32 to vector<8x128xf32>
    %34 = arith.mulf %33, %18 : vector<8x128xf32>
    %35 = arith.mulf %34, %18 : vector<8x128xf32>
    %cst_18 = arith.constant 1.000000e+00 : f32
    %36 = vector.broadcast %cst_18 : f32 to vector<8x128xf32>
    %37 = arith.subf %36, %35 : vector<8x128xf32>
    %c5 = arith.constant 5 : index
    %c0_19 = arith.constant 0 : index
    %c0_20 = arith.constant 0 : index
    %38 = vector.load %arg2[%c5, %c0_19, %c0_20] : memref<13x8x128xf32, #tpu.memory_space<vmem>>, vector<1x8x128xf32>
    %39 = vector.shape_cast %38 : vector<1x8x128xf32> to vector<8x128xf32>
    %40 = vector.shape_cast %32 : vector<8x128xf32> to vector<1x8x128xf32>
    tpu.vector_store %arg2[%c5, %c0_19, %c0_20], %40 {strides = array<i32>} : memref<13x8x128xf32, #tpu.memory_space<vmem>>, vector<1x8x128xf32>,
    %c6 = arith.constant 6 : index
    %c0_21 = arith.constant 0 : index
    %c0_22 = arith.constant 0 : index
    %41 = vector.load %arg2[%c6, %c0_21, %c0_22] : memref<13x8x128xf32, #tpu.memory_space<vmem>>, vector<1x8x128xf32>
    %42 = vector.shape_cast %41 : vector<1x8x128xf32> to vector<8x128xf32>
    %43 = vector.shape_cast %37 : vector<8x128xf32> to vector<1x8x128xf32>
    tpu.vector_store %arg2[%c6, %c0_21, %c0_22], %43 {strides = array<i32>} : memref<13x8x128xf32, #tpu.memory_space<vmem>>, vector<1x8x128xf32>,
    %cst_23 = arith.constant 2.000000e+00 : f32
    %44 = vector.broadcast %cst_23 : f32 to vector<8x128xf32>
    %45 = arith.mulf %44, %32 : vector<8x128xf32>
    %46 = arith.mulf %45, %37 : vector<8x128xf32>
    %cst_24 = arith.constant 2.000000e+00 : f32
    %47 = vector.broadcast %cst_24 : f32 to vector<8x128xf32>
    %48 = arith.mulf %47, %32 : vector<8x128xf32>
    %49 = arith.mulf %48, %32 : vector<8x128xf32>
    %cst_25 = arith.constant 1.000000e+00 : f32
    %50 = vector.broadcast %cst_25 : f32 to vector<8x128xf32>
    %51 = arith.subf %50, %49 : vector<8x128xf32>
    %c7 = arith.constant 7 : index
    %c0_26 = arith.constant 0 : index
    %c0_27 = arith.constant 0 : index
    %52 = vector.load %arg2[%c7, %c0_26, %c0_27] : memref<13x8x128xf32, #tpu.memory_space<vmem>>, vector<1x8x128xf32>
    %53 = vector.shape_cast %52 : vector<1x8x128xf32> to vector<8x128xf32>
    %54 = vector.shape_cast %46 : vector<8x128xf32> to vector<1x8x128xf32>
    tpu.vector_store %arg2[%c7, %c0_26, %c0_27], %54 {strides = array<i32>} : memref<13x8x128xf32, #tpu.memory_space<vmem>>, vector<1x8x128xf32>,
    %c8 = arith.constant 8 : index
    %c0_28 = arith.constant 0 : index
    %c0_29 = arith.constant 0 : index
    %55 = vector.load %arg2[%c8, %c0_28, %c0_29] : memref<13x8x128xf32, #tpu.memory_space<vmem>>, vector<1x8x128xf32>
    %56 = vector.shape_cast %55 : vector<1x8x128xf32> to vector<8x128xf32>
    %57 = vector.shape_cast %51 : vector<8x128xf32> to vector<1x8x128xf32>
    tpu.vector_store %arg2[%c8, %c0_28, %c0_29], %57 {strides = array<i32>} : memref<13x8x128xf32, #tpu.memory_space<vmem>>, vector<1x8x128xf32>,
    %cst_30 = arith.constant 2.000000e+00 : f32
    %58 = vector.broadcast %cst_30 : f32 to vector<8x128xf32>
    %59 = arith.mulf %58, %46 : vector<8x128xf32>
    %60 = arith.mulf %59, %51 : vector<8x128xf32>
    %cst_31 = arith.constant 2.000000e+00 : f32
    %61 = vector.broadcast %cst_31 : f32 to vector<8x128xf32>
    %62 = arith.mulf %61, %46 : vector<8x128xf32>
    %63 = arith.mulf %62, %46 : vector<8x128xf32>
    %cst_32 = arith.constant 1.000000e+00 : f32
    %64 = vector.broadcast %cst_32 : f32 to vector<8x128xf32>
    %65 = arith.subf %64, %63 : vector<8x128xf32>
    %c9 = arith.constant 9 : index
    %c0_33 = arith.constant 0 : index
    %c0_34 = arith.constant 0 : index
    %66 = vector.load %arg2[%c9, %c0_33, %c0_34] : memref<13x8x128xf32, #tpu.memory_space<vmem>>, vector<1x8x128xf32>
    %67 = vector.shape_cast %66 : vector<1x8x128xf32> to vector<8x128xf32>
    %68 = vector.shape_cast %60 : vector<8x128xf32> to vector<1x8x128xf32>
    tpu.vector_store %arg2[%c9, %c0_33, %c0_34], %68 {strides = array<i32>} : memref<13x8x128xf32, #tpu.memory_space<vmem>>, vector<1x8x128xf32>,
    %c10 = arith.constant 10 : index
    %c0_35 = arith.constant 0 : index
    %c0_36 = arith.constant 0 : index
    %69 = vector.load %arg2[%c10, %c0_35, %c0_36] : memref<13x8x128xf32, #tpu.memory_space<vmem>>, vector<1x8x128xf32>
    %70 = vector.shape_cast %69 : vector<1x8x128xf32> to vector<8x128xf32>
    %71 = vector.shape_cast %65 : vector<8x128xf32> to vector<1x8x128xf32>
    tpu.vector_store %arg2[%c10, %c0_35, %c0_36], %71 {strides = array<i32>} : memref<13x8x128xf32, #tpu.memory_space<vmem>>, vector<1x8x128xf32>,
    %cst_37 = arith.constant 2.000000e+00 : f32
    %72 = vector.broadcast %cst_37 : f32 to vector<8x128xf32>
    %73 = arith.mulf %72, %60 : vector<8x128xf32>
    %74 = arith.mulf %73, %65 : vector<8x128xf32>
    %cst_38 = arith.constant 2.000000e+00 : f32
    %75 = vector.broadcast %cst_38 : f32 to vector<8x128xf32>
    %76 = arith.mulf %75, %60 : vector<8x128xf32>
    %77 = arith.mulf %76, %60 : vector<8x128xf32>
    %cst_39 = arith.constant 1.000000e+00 : f32
    %78 = vector.broadcast %cst_39 : f32 to vector<8x128xf32>
    %79 = arith.subf %78, %77 : vector<8x128xf32>
    %c11 = arith.constant 11 : index
    %c0_40 = arith.constant 0 : index
    %c0_41 = arith.constant 0 : index
    %80 = vector.load %arg2[%c11, %c0_40, %c0_41] : memref<13x8x128xf32, #tpu.memory_space<vmem>>, vector<1x8x128xf32>
    %81 = vector.shape_cast %80 : vector<1x8x128xf32> to vector<8x128xf32>
    %82 = vector.shape_cast %74 : vector<8x128xf32> to vector<1x8x128xf32>
    tpu.vector_store %arg2[%c11, %c0_40, %c0_41], %82 {strides = array<i32>} : memref<13x8x128xf32, #tpu.memory_space<vmem>>, vector<1x8x128xf32>,
    %c12 = arith.constant 12 : index
    %c0_42 = arith.constant 0 : index
    %c0_43 = arith.constant 0 : index
    %83 = vector.load %arg2[%c12, %c0_42, %c0_43] : memref<13x8x128xf32, #tpu.memory_space<vmem>>, vector<1x8x128xf32>
    %84 = vector.shape_cast %83 : vector<1x8x128xf32> to vector<8x128xf32>
    %85 = vector.shape_cast %79 : vector<8x128xf32> to vector<1x8x128xf32>
    tpu.vector_store %arg2[%c12, %c0_42, %c0_43], %85 {strides = array<i32>} : memref<13x8x128xf32, #tpu.memory_space<vmem>>, vector<1x8x128xf32>,
    return
  }
  func.func @transform_0(%arg0: i32) -> (i32, i32) {
    %c0_i32 = arith.constant 0 : i32
    %c0_i32_0 = arith.constant 0 : i32
    return %arg0, %c0_i32 : i32, i32
  }
  func.func @transform_1(%arg0: i32) -> (i32, i32, i32) {
    %c0_i32 = arith.constant 0 : i32
    %c0_i32_0 = arith.constant 0 : i32
    %c0_i32_1 = arith.constant 0 : i32
    return %c0_i32, %arg0, %c0_i32_0 : i32, i32, i32
  }
}

</mosaic_0001>

<llo_original>
// kernel: tpu_custom_call.1
$region0: #{tpu_custom_call.1}
  #allocation0 [shape = 'u32[]', space=smem, size = 0x4, offset = 0x4, fixed_abs, tag = 'smem constant byte address 0x4 - core index']
  #allocation1 [shape = 'u32[144,128]{1,0:T(1,128)}', space=vmem, size = 0x12000, scoped, tag = 'internal scratch']
  %s0 = inlined_call_operand.hbm [shape: f32[8,128], index: 0, kind: input, shape index: {}]
  %s1 = inlined_call_operand.hbm [shape: f32[13,8,128], index: 1, kind: output, shape index: {}]
  %s2 = sld [smem:[#allocation0]]
  $region18: #{tpu_custom_call.1} parent=0
    _
  %s4 = ssub.s32 1, %s2
  %s5 = scalar_select 0, %s4, %s2
  $region1: #{tpu_custom_call.1} parent=0
    #allocation2 [shape = 'u8[4096]{0}', space=vmem, size = 0x1000, scoped, tag = 'input window, operand 0, single buffered']
    #allocation3 [shape = 's32[1]{0}', space=sflag, size = 0x4, scoped, tag = 'scoped memory for tpu_custom_call.1']
    #allocation4 [shape = 's32[1]{0}', space=sflag, size = 0x4, scoped, tag = 'scoped memory for tpu_custom_call.1']
    #allocation5 [shape = 'u8[53248]{0}', space=vmem, size = 0xd000, scoped, tag = 'output window, operand 0, single buffered']
    %6 = vsyncpa [#allocation3], 0
    %7 = vsyncpa [#allocation4], 0
    // Predicated region
    $region2: #{tpu_custom_call.1} parent=1 // pred_check
      _
    $region3: #{tpu_custom_call.1} parent=1 // pred_check_branch
      %9 = sbr.rel (0) target = $region5
    $region4: #{tpu_custom_call.1} parent=1 // pred_region
      %s11 = ssub.s32 128, 128
      %12 = vsyncadd [#allocation3], %s11
      %s14 = sshll.u32 [#allocation2], 4
      %s15 = int_to_ptr.vmem [resolvable:$true] %s14
      %17 = dma.hbm_to_vmem [thread:$0]  %s0, 128, %s15, [#allocation3]
    $region5: #{tpu_custom_call.1} parent=1 // pred_fallthru
      _
    // Predicated region
    $region6: #{tpu_custom_call.1} parent=1 // pred_check
      _
    $region7: #{tpu_custom_call.1} parent=1 // pred_check_branch
      %19 = sbr.rel (0) target = $region9
    $region8: #{tpu_custom_call.1} parent=1 // pred_region
      %20 = dma.done [#allocation3], 128
    $region9: #{tpu_custom_call.1} parent=1 // pred_fallthru
      _
    %v21 = vld [vmem:[#allocation2] sm:$0xff]
    %22 = vst [vmem:[#allocation5] sm:$0xff] %v21
    %v23 = vand.u32 2147483647, %v21
    %vm24 = vcmp.le.f32.partialorder %v23, 0.7853982
    %vm25 = vcmp.lt.s32.totalorder %v21, 0
    %v26 = vand.u32 %v21, 2139095040
    %v27 = vshrl.u32 %v26, 23
    %v28 = vsub.s32 %v27, 127
    %v29 = vand.u32 2147483647, %v21
    %v30 = vand.u32 %v29, 8388607
    %v31 = vor.u32 %v30, 8388608
    %v32 = vsub.s32 0, %v31
    %v33 = vadd.s32 %v28, 1
    %vm34 = vcmp.gt.s32.totalorder %v33, 0
    %v35 = vsel %vm34, %v33, 0
    %v36 = vshrl.u32 %v35, 5
    %v37 = vand.u32 %v35, 31
    %v38 = vsub.s32 32, %v37
    %v39 = vshrl.u32 683565275, %v38
    %v40 = vshll.u32 683565275, %v37
    %v41 = vshrl.u32 2475754826, %v38
    %v42 = vor.u32 %v40, %v41
    %v43 = vshll.u32 2475754826, %v37
    %v44 = vshrl.u32 2131351028, %v38
    %v45 = vor.u32 %v43, %v44
    %v46 = vshll.u32 2131351028, %v37
    %v47 = vshrl.u32 2102212464, %v38
    %v48 = vor.u32 %v46, %v47
    %v49 = vshll.u32 2102212464, %v37
    %v50 = vshrl.u32 920167782, %v38
    %v51 = vor.u32 %v49, %v50
    %v52 = vshll.u32 920167782, %v37
    %v53 = vshrl.u32 1326507024, %v38
    %v54 = vor.u32 %v52, %v53
    %vm55 = vcmp.lt.s32.totalorder %v36, 1
    %vm56 = vcmp.lt.s32.totalorder %v36, 2
    %vm57 = vcmp.lt.s32.totalorder %v36, 3
    %vm58 = vcmp.lt.s32.totalorder %v36, 4
    %v59 = vsel %vm55, %v39, %v42
    %v60 = vsel %vm58, %v48, 2102212464
    %v61 = vsel %vm57, %v45, %v60
    %v62 = vsel %vm56, %v59, %v61
    %v63 = vsel %vm55, %v42, %v45
    %v64 = vsel %vm58, %v51, 920167782
    %v65 = vsel %vm57, %v48, %v64
    %v66 = vsel %vm56, %v63, %v65
    %v67 = vsel %vm55, %v45, %v48
    %v68 = vsel %vm58, %v54, 1326507024
    %v69 = vsel %vm57, %v51, %v68
    %v70 = vsel %vm56, %v67, %v69
    %v71 = vshll.u32 %v31, 8
    %v72 = vmul.u32.u64.compose %v71, %v70
    %v73 = vextract.low.u32 %v72
    %v74 = vextract.high.u32 %v72
    %v75 = vmul.u32.u64.compose %v71, %v66
    %v76 = vextract.low.u32 %v75
    %v77 = vextract.high.u32 %v75
    %v78 = vmul.u32 %v71, %v62
    %v79 = vadd.s32 %v74, %v76
    %vm80 = vc.u32 %v74, %v76
    %v81 = vadd.s32 %v77, 1
    %v82 = vsel %vm80, %v81, %v77
    %v83 = vadd.s32 %v78, %v82
    %v84 = vadd.s32 %v83, 536870912
    %v85 = vshrl.u32 %v84, 30
    %v86 = vshll.u32 %v85, 30
    %v87 = vsub.s32 %v83, %v86
    %vm88 = vcmp.lt.s32.totalorder %v87, 0
    %v89 = vsub.s32 0, %v87
    %v90 = vsel %vm88, %v89, %v87
    %v91 = vclz %v90
    %v92 = vsub.s32 %v91, 2
    %vm93 = vcmp.gt.s32.totalorder 0, %v92
    %v94 = vsel %vm93, 0, %v92
    %v95 = vsub.s32 32, %v94
    %v96 = vshll.u32 %v87, %v94
    %v97 = vshrl.u32 %v79, %v95
    %v98 = vor.u32 %v96, %v97
    %v99 = vsub.s32 4294967266, %v94
    %v100 = vadd.s32 %v99, 127
    %v101 = vshll.u32 %v100, 23
    %v102 = vor.u32 4788187, %v101
    %v103 = vand.u32 2147483647, %v102
    %v105 = vcvt.s32.f32 %v98
    %v106 = vmul.f32 %v105, %v103
    %v107 = vxor.u32 %v106, 2147483648
    %v108 = vsel %vm25, %v107, %v106
    %v109 = vsub.s32 4, %v85
    %v110 = vsel %vm25, %v109, %v85
    %v111 = vsel %vm24, %v21, %v108
    %v112 = vsel %vm24, 0, %v110
    %v113 = vcosq.f32.pop %v111
    %v114 = vsinq.f32.pop %v111
    %vm115 = vweird.f32 %v21
    %v116 = vadd.s32 %v112, 3
    %v117 = vand.u32 %v116, 3
    %vm118 = vcmp.lt.s32.totalorder %v117, 2
    %vm119 = vcmp.eq.s32.totalorder %v117, 0
    %v120 = vxor.u32 %v114, 2147483648
    %v121 = vsel %vm119, %v113, %v120
    %vm122 = vcmp.eq.s32.totalorder %v117, 2
    %v123 = vxor.u32 %v113, 2147483648
    %v124 = vsel %vm122, %v123, %v114
    %v125 = vsel %vm118, %v121, %v124
    %v126 = vsel %vm115, nan, %v125
    %v127 = vand.u32 2147483647, %v21
    %vm128 = vcmp.le.f32.partialorder %v127, 0.7853982
    %vm129 = vcmp.lt.s32.totalorder %v21, 0
    %v130 = vand.u32 %v21, 2139095040
    %v131 = vshrl.u32 %v130, 23
    %v132 = vsub.s32 %v131, 127
    %v133 = vand.u32 2147483647, %v21
    %v134 = vand.u32 %v133, 8388607
    %v135 = vor.u32 %v134, 8388608
    %v136 = vsub.s32 0, %v135
    %v137 = vadd.s32 %v132, 1
    %vm138 = vcmp.gt.s32.totalorder %v137, 0
    %v139 = vsel %vm138, %v137, 0
    %v140 = vshrl.u32 %v139, 5
    %v141 = vand.u32 %v139, 31
    %v142 = vsub.s32 32, %v141
    %v143 = vshrl.u32 683565275, %v142
    %v144 = vshll.u32 683565275, %v141
    %v145 = vshrl.u32 2475754826, %v142
    %v146 = vor.u32 %v144, %v145
    %v147 = vshll.u32 2475754826, %v141
    %v148 = vshrl.u32 2131351028, %v142
    %v149 = vor.u32 %v147, %v148
    %v150 = vshll.u32 2131351028, %v141
    %v151 = vshrl.u32 2102212464, %v142
    %v152 = vor.u32 %v150, %v151
    %v153 = vshll.u32 2102212464, %v141
    %v154 = vshrl.u32 920167782, %v142
    %v155 = vor.u32 %v153, %v154
    %v156 = vshll.u32 920167782, %v141
    %v157 = vshrl.u32 1326507024, %v142
    %v158 = vor.u32 %v156, %v157
    %vm159 = vcmp.lt.s32.totalorder %v140, 1
    %vm160 = vcmp.lt.s32.totalorder %v140, 2
    %vm161 = vcmp.lt.s32.totalorder %v140, 3
    %vm162 = vcmp.lt.s32.totalorder %v140, 4
    %v163 = vsel %vm159, %v143, %v146
    %v164 = vsel %vm162, %v152, 2102212464
    %v165 = vsel %vm161, %v149, %v164
    %v166 = vsel %vm160, %v163, %v165
    %v167 = vsel %vm159, %v146, %v149
    %v168 = vsel %vm162, %v155, 920167782
    %v169 = vsel %vm161, %v152, %v168
    %v170 = vsel %vm160, %v167, %v169
    %v171 = vsel %vm159, %v149, %v152
    %v172 = vsel %vm162, %v158, 1326507024
    %v173 = vsel %vm161, %v155, %v172
    %v174 = vsel %vm160, %v171, %v173
    %v175 = vshll.u32 %v135, 8
    %v176 = vmul.u32.u64.compose %v175, %v174
    %v177 = vextract.low.u32 %v176
    %v178 = vextract.high.u32 %v176
    %v179 = vmul.u32.u64.compose %v175, %v170
    %v180 = vextract.low.u32 %v179
    %v181 = vextract.high.u32 %v179
    %v182 = vmul.u32 %v175, %v166
    %v183 = vadd.s32 %v178, %v180
    %vm184 = vc.u32 %v178, %v180
    %v185 = vadd.s32 %v181, 1
    %v186 = vsel %vm184, %v185, %v181
    %v187 = vadd.s32 %v182, %v186
    %v188 = vadd.s32 %v187, 536870912
    %v189 = vshrl.u32 %v188, 30
    %v190 = vshll.u32 %v189, 30
    %v191 = vsub.s32 %v187, %v190
    %vm192 = vcmp.lt.s32.totalorder %v191, 0
    %v193 = vsub.s32 0, %v191
    %v194 = vsel %vm192, %v193, %v191
    %v195 = vclz %v194
    %v196 = vsub.s32 %v195, 2
    %vm197 = vcmp.gt.s32.totalorder 0, %v196
    %v198 = vsel %vm197, 0, %v196
    %v199 = vsub.s32 32, %v198
    %v200 = vshll.u32 %v191, %v198
    %v201 = vshrl.u32 %v183, %v199
    %v202 = vor.u32 %v200, %v201
    %v203 = vsub.s32 4294967266, %v198
    %v204 = vadd.s32 %v203, 127
    %v205 = vshll.u32 %v204, 23
    %v206 = vor.u32 4788187, %v205
    %v207 = vand.u32 2147483647, %v206
    %v209 = vcvt.s32.f32 %v202
    %v210 = vmul.f32 %v209, %v207
    %v211 = vxor.u32 %v210, 2147483648
    %v212 = vsel %vm129, %v211, %v210
    %v213 = vsub.s32 4, %v189
    %v214 = vsel %vm129, %v213, %v189
    %v215 = vsel %vm128, %v21, %v212
    %v216 = vsel %vm128, 0, %v214
    %v217 = vcosq.f32.pop %v215
    %v218 = vsinq.f32.pop %v215
    %vm219 = vweird.f32 %v21
    %v220 = vand.u32 %v216, 3
    %vm221 = vcmp.lt.s32.totalorder %v220, 2
    %vm222 = vcmp.eq.s32.totalorder %v220, 0
    %v223 = vxor.u32 %v218, 2147483648
    %v224 = vsel %vm222, %v217, %v223
    %vm225 = vcmp.eq.s32.totalorder %v220, 2
    %v226 = vxor.u32 %v217, 2147483648
    %v227 = vsel %vm225, %v226, %v218
    %v228 = vsel %vm221, %v224, %v227
    %v229 = vsel %vm219, nan, %v228
    %s230 = scalar_lea.vmem [#allocation5], 8
    %231 = vst [vmem:[%s230] sm:$0xff] %v126
    %s232 = scalar_lea.vmem [#allocation5], 16
    %233 = vst [vmem:[%s232] sm:$0xff] %v229
    %v234 = vmul.f32 %v126, 2.0
    %v235 = vmul.f32 %v234, %v229
    %v236 = vmul.f32 %v234, %v126
    %v237 = vsub.f32 1.0, %v236
    %s238 = scalar_lea.vmem [#allocation5], 24
    %239 = vst [vmem:[%s238] sm:$0xff] %v235
    %s240 = scalar_lea.vmem [#allocation5], 32
    %241 = vst [vmem:[%s240] sm:$0xff] %v237
    %v242 = vmul.f32 %v235, 2.0
    %v243 = vmul.f32 %v242, %v237
    %v244 = vmul.f32 %v242, %v235
    %v245 = vsub.f32 1.0, %v244
    %s246 = scalar_lea.vmem [#allocation5], 40
    %247 = vst [vmem:[%s246] sm:$0xff] %v243
    %s248 = scalar_lea.vmem [#allocation5], 48
    %249 = vst [vmem:[%s248] sm:$0xff] %v245
    %v250 = vmul.f32 %v243, 2.0
    %v251 = vmul.f32 %v250, %v245
    %v252 = vmul.f32 %v250, %v243
    %v253 = vsub.f32 1.0, %v252
    %s254 = scalar_lea.vmem [#allocation5], 56
    %255 = vst [vmem:[%s254] sm:$0xff] %v251
    %s256 = scalar_lea.vmem [#allocation5], 64
    %257 = vst [vmem:[%s256] sm:$0xff] %v253
    %v258 = vmul.f32 %v251, 2.0
    %v259 = vmul.f32 %v258, %v253
    %v260 = vmul.f32 %v258, %v251
    %v261 = vsub.f32 1.0, %v260
    %s262 = scalar_lea.vmem [#allocation5], 72
    %263 = vst [vmem:[%s262] sm:$0xff] %v259
    %s264 = scalar_lea.vmem [#allocation5], 80
    %265 = vst [vmem:[%s264] sm:$0xff] %v261
    %v266 = vmul.f32 %v259, 2.0
    %v267 = vmul.f32 %v266, %v261
    %v268 = vmul.f32 %v266, %v259
    %v269 = vsub.f32 1.0, %v268
    %s270 = scalar_lea.vmem [#allocation5], 88
    %271 = vst [vmem:[%s270] sm:$0xff] %v267
    %s272 = scalar_lea.vmem [#allocation5], 96
    %273 = vst [vmem:[%s272] sm:$0xff] %v269
    // Predicated region
    $region10: #{tpu_custom_call.1} parent=1 // pred_check
      _
    $region11: #{tpu_custom_call.1} parent=1 // pred_check_branch
      %275 = sbr.rel (0) target = $region13
    $region12: #{tpu_custom_call.1} parent=1 // pred_region
      %s277 = ssub.s32 1664, 1664
      %278 = vsyncadd [#allocation4], %s277
      %s279 = sshll.u32 [#allocation5], 4
      %s280 = int_to_ptr.vmem [resolvable:$true] %s279
      %285 = dma.vmem_to_hbm [thread:$0]  %s280, 1664, %s1, [#allocation4], 128, 128, 8
    $region13: #{tpu_custom_call.1} parent=1 // pred_fallthru
      _
    // Predicated region
    $region14: #{tpu_custom_call.1} parent=1 // pred_check
      _
    $region15: #{tpu_custom_call.1} parent=1 // pred_check_branch
      %287 = sbr.rel (0) target = $region17
    $region16: #{tpu_custom_call.1} parent=1 // pred_region
      %288 = dma.done [#allocation4], 1664
    $region17: #{tpu_custom_call.1} parent=1 // pred_fallthru
      _
    %289 = vsyncpa [#allocation3], 1
    %290 = vsyncpa [#allocation4], 1

</llo_original>
